<compile_context>
chip_gen: v7x
topology: tpu7x:2x2x1
jax: 0.10.0
libtpu: 0.0.40
codegen_flags: <defaults>
</compile_context>

<pallas_src>
import jax
import jax.numpy as jnp
from jax.experimental import pallas as pl
from jax.experimental.pallas import tpu as pltpu

IN_F = 4   # fc1 in_features
HID_F = 6  # fc1 out_features / fc2 in_features


def mlp_kernel(x_ref, w1_ref, b1_ref, w2_ref, b2_ref, o_ref):
    # x_ref: (4, T) f32 in VMEM, batch on lanes.
    # w1_ref (4,6), b1_ref (6,), w2_ref (6,), b2_ref (1,) are SMEM scalars.
    x = x_ref[...]                                        # (4, T)
    t = x.shape[1]
    # y = sigmoid( sum_j w2[j] * sigmoid( sum_k w1[k,j]*x[k,:] + b1[j] ) + b2 )
    y = jnp.full((1, t), b2_ref[0], dtype=jnp.float32)
    for j in range(HID_F):                                # fully unrolled: 24 + 6 FMAs
        h = jnp.full((1, t), b1_ref[j], dtype=jnp.float32)
        for k in range(IN_F):
            h = h + w1_ref[k, j] * x[k:k + 1, :]
        y = y + w2_ref[j] * jax.nn.sigmoid(h)             # sigmoid -> EUP slot
    o_ref[...] = jax.nn.sigmoid(y).astype(o_ref.dtype)


def mlp_forward(x, w1, b1, w2, b2, *, lane_tile=2048):
    """x: (B, 4) f32 -> (B, 1) f32, equals sigmoid(sigmoid(x@w1+b1)@w2+b2)."""
    B = x.shape[0]

    # Lane-dense layout: put batch on the 128-lane axis.
    x_t = x.T                                             # (4, B)
    Bp = ((B + 127) // 128) * 128                         # lane alignment
    tile = min(lane_tile, Bp)                             # bounded VMEM per step
    Bp = ((Bp + tile - 1) // tile) * tile                 # Bp multiple of tile
    if Bp != B:
        x_t = jnp.pad(x_t, ((0, 0), (0, Bp - B)))
    grid = (Bp // tile,)

    cost = pl.CostEstimate(
        flops=2 * B * (IN_F * HID_F + HID_F),
        transcendentals=B * (HID_F + 1),
        bytes_accessed=Bp * IN_F * 4 + Bp * 4,
    )

    out_t = pl.pallas_call(
        mlp_kernel,
        out_shape=jax.ShapeDtypeStruct((1, Bp), jnp.float32),
        grid=grid,
        in_specs=[
            # x is the only streamed operand: (4, tile) blocks, double-buffered.
            pl.BlockSpec((IN_F, tile), lambda i: (0, i)),
            # Weights/biases stay resident as SMEM scalars (no padded VMEM tiles).
            pl.BlockSpec(memory_space=pltpu.SMEM),        # w1 (4, 6)
            pl.BlockSpec(memory_space=pltpu.SMEM),        # b1 (6,)
            pl.BlockSpec(memory_space=pltpu.SMEM),        # w2 (6,)
            pl.BlockSpec(memory_space=pltpu.SMEM),        # b2 (1,)
        ],
        out_specs=pl.BlockSpec((1, tile), lambda i: (0, i)),
        compiler_params=pltpu.CompilerParams(
            dimension_semantics=("parallel",),
        ),
        cost_estimate=cost,
    )(x_t, w1, b1, w2, b2)

    return out_t[0, :B].reshape(B, 1)


def init_params(key):
    # Mirrors nn.Linear's U(-1/sqrt(fan_in), 1/sqrt(fan_in)).
    k1, k2, k3, k4 = jax.random.split(key, 4)
    bound1 = 1.0 / jnp.sqrt(float(IN_F))
    bound2 = 1.0 / jnp.sqrt(float(HID_F))
    w1 = jax.random.uniform(k1, (IN_F, HID_F), jnp.float32, -bound1, bound1)
    b1 = jax.random.uniform(k2, (HID_F,), jnp.float32, -bound1, bound1)
    w2 = jax.random.uniform(k3, (HID_F,), jnp.float32, -bound2, bound2)
    b2 = jax.random.uniform(k4, (1,), jnp.float32, -bound2, bound2)
    return w1, b1, w2, b2


if __name__ == "__main__":
    key = jax.random.PRNGKey(0)
    k_x, k_p = jax.random.split(key)

    batch = 8
    x = jax.random.normal(k_x, (batch, IN_F), jnp.float32)
    w1, b1, w2, b2 = init_params(k_p)

    out = mlp_forward(x, w1, b1, w2, b2)
    out = jax.block_until_ready(out)

    # Reference in plain JAX (same math as the PyTorch forward).
    ref = jax.nn.sigmoid(
        jax.nn.sigmoid(x @ w1 + b1[None, :]) @ w2[:, None] + b2[None, :]
    )
    assert out.shape == (batch, 1)
    assert jnp.allclose(out, ref, atol=1e-5), "mismatch vs reference"

    print("KERNEL_OK")
</pallas_src>

<mosaic_0001>
module attributes {stable_mosaic.version = 11 : i64} {
  func.func @mlp_kernel(%arg0: i32, %arg1: memref<4x128xf32, #tpu.memory_space<vmem>>, %arg2: memref<4x6xf32, #tpu.memory_space<smem>>, %arg3: memref<6xf32, #tpu.memory_space<smem>>, %arg4: memref<6xf32, #tpu.memory_space<smem>>, %arg5: memref<1xf32, #tpu.memory_space<smem>>, %arg6: memref<1x128xf32, #tpu.memory_space<vmem>>) attributes {dimension_semantics = [#tpu.dimension_semantics<parallel>], iteration_bounds = array<i64: 1>, scalar_prefetch = 0 : i64, scratch_operands = 0 : i64, tpu.core_type = #tpu.core_type<tc>, window_params = [{transform_indices = @transform_0, window_bounds = array<i64: 4, 128>}, {transform_indices = @transform_1, window_bounds = array<i64: 4, 6>}, {transform_indices = @transform_2, window_bounds = array<i64: 6>}, {transform_indices = @transform_3, window_bounds = array<i64: 6>}, {transform_indices = @transform_4, window_bounds = array<i64: 1>}, {transform_indices = @transform_5, window_bounds = array<i64: 1, 128>}]} {
    %c0 = arith.constant 0 : index
    %c0_0 = arith.constant 0 : index
    %0 = vector.load %arg1[%c0, %c0_0] : memref<4x128xf32, #tpu.memory_space<vmem>>, vector<4x128xf32>
    %c0_1 = arith.constant 0 : index
    %1 = memref.load %arg5[%c0_1] : memref<1xf32, #tpu.memory_space<smem>>
    %2 = vector.broadcast %1 : f32 to vector<1x128xf32>
    %c0_2 = arith.constant 0 : index
    %3 = memref.load %arg3[%c0_2] : memref<6xf32, #tpu.memory_space<smem>>
    %4 = vector.broadcast %3 : f32 to vector<1x128xf32>
    %c0_3 = arith.constant 0 : index
    %c0_4 = arith.constant 0 : index
    %5 = memref.load %arg2[%c0_3, %c0_4] : memref<4x6xf32, #tpu.memory_space<smem>>
    %6 = vector.extract_strided_slice %0 {offsets = [0, 0], sizes = [1, 128], strides = [1, 1]} : vector<4x128xf32> to vector<1x128xf32>
    %7 = vector.broadcast %5 : f32 to vector<1x128xf32>
    %8 = arith.mulf %7, %6 : vector<1x128xf32>
    %9 = arith.addf %4, %8 : vector<1x128xf32>
    %c1 = arith.constant 1 : index
    %c0_5 = arith.constant 0 : index
    %10 = memref.load %arg2[%c1, %c0_5] : memref<4x6xf32, #tpu.memory_space<smem>>
    %11 = vector.extract_strided_slice %0 {offsets = [1, 0], sizes = [1, 128], strides = [1, 1]} : vector<4x128xf32> to vector<1x128xf32>
    %12 = vector.broadcast %10 : f32 to vector<1x128xf32>
    %13 = arith.mulf %12, %11 : vector<1x128xf32>
    %14 = arith.addf %9, %13 : vector<1x128xf32>
    %c2 = arith.constant 2 : index
    %c0_6 = arith.constant 0 : index
    %15 = memref.load %arg2[%c2, %c0_6] : memref<4x6xf32, #tpu.memory_space<smem>>
    %16 = vector.extract_strided_slice %0 {offsets = [2, 0], sizes = [1, 128], strides = [1, 1]} : vector<4x128xf32> to vector<1x128xf32>
    %17 = vector.broadcast %15 : f32 to vector<1x128xf32>
    %18 = arith.mulf %17, %16 : vector<1x128xf32>
    %19 = arith.addf %14, %18 : vector<1x128xf32>
    %c3 = arith.constant 3 : index
    %c0_7 = arith.constant 0 : index
    %20 = memref.load %arg2[%c3, %c0_7] : memref<4x6xf32, #tpu.memory_space<smem>>
    %21 = vector.extract_strided_slice %0 {offsets = [3, 0], sizes = [1, 128], strides = [1, 1]} : vector<4x128xf32> to vector<1x128xf32>
    %22 = vector.broadcast %20 : f32 to vector<1x128xf32>
    %23 = arith.mulf %22, %21 : vector<1x128xf32>
    %24 = arith.addf %19, %23 : vector<1x128xf32>
    %c0_8 = arith.constant 0 : index
    %25 = memref.load %arg4[%c0_8] : memref<6xf32, #tpu.memory_space<smem>>
    %26 = arith.negf %24 : vector<1x128xf32>
    %27 = math.exp %26 : vector<1x128xf32>
    %cst = arith.constant 1.000000e+00 : f32
    %28 = vector.broadcast %cst : f32 to vector<1x128xf32>
    %29 = arith.addf %28, %27 : vector<1x128xf32>
    %30 = arith.divf %28, %29 : vector<1x128xf32>
    %31 = vector.broadcast %25 : f32 to vector<1x128xf32>
    %32 = arith.mulf %31, %30 : vector<1x128xf32>
    %33 = arith.addf %2, %32 : vector<1x128xf32>
    %c1_9 = arith.constant 1 : index
    %34 = memref.load %arg3[%c1_9] : memref<6xf32, #tpu.memory_space<smem>>
    %35 = vector.broadcast %34 : f32 to vector<1x128xf32>
    %c0_10 = arith.constant 0 : index
    %c1_11 = arith.constant 1 : index
    %36 = memref.load %arg2[%c0_10, %c1_11] : memref<4x6xf32, #tpu.memory_space<smem>>
    %37 = vector.extract_strided_slice %0 {offsets = [0, 0], sizes = [1, 128], strides = [1, 1]} : vector<4x128xf32> to vector<1x128xf32>
    %38 = vector.broadcast %36 : f32 to vector<1x128xf32>
    %39 = arith.mulf %38, %37 : vector<1x128xf32>
    %40 = arith.addf %35, %39 : vector<1x128xf32>
    %c1_12 = arith.constant 1 : index
    %c1_13 = arith.constant 1 : index
    %41 = memref.load %arg2[%c1_12, %c1_13] : memref<4x6xf32, #tpu.memory_space<smem>>
    %42 = vector.extract_strided_slice %0 {offsets = [1, 0], sizes = [1, 128], strides = [1, 1]} : vector<4x128xf32> to vector<1x128xf32>
    %43 = vector.broadcast %41 : f32 to vector<1x128xf32>
    %44 = arith.mulf %43, %42 : vector<1x128xf32>
    %45 = arith.addf %40, %44 : vector<1x128xf32>
    %c2_14 = arith.constant 2 : index
    %c1_15 = arith.constant 1 : index
    %46 = memref.load %arg2[%c2_14, %c1_15] : memref<4x6xf32, #tpu.memory_space<smem>>
    %47 = vector.extract_strided_slice %0 {offsets = [2, 0], sizes = [1, 128], strides = [1, 1]} : vector<4x128xf32> to vector<1x128xf32>
    %48 = vector.broadcast %46 : f32 to vector<1x128xf32>
    %49 = arith.mulf %48, %47 : vector<1x128xf32>
    %50 = arith.addf %45, %49 : vector<1x128xf32>
    %c3_16 = arith.constant 3 : index
    %c1_17 = arith.constant 1 : index
    %51 = memref.load %arg2[%c3_16, %c1_17] : memref<4x6xf32, #tpu.memory_space<smem>>
    %52 = vector.extract_strided_slice %0 {offsets = [3, 0], sizes = [1, 128], strides = [1, 1]} : vector<4x128xf32> to vector<1x128xf32>
    %53 = vector.broadcast %51 : f32 to vector<1x128xf32>
    %54 = arith.mulf %53, %52 : vector<1x128xf32>
    %55 = arith.addf %50, %54 : vector<1x128xf32>
    %c1_18 = arith.constant 1 : index
    %56 = memref.load %arg4[%c1_18] : memref<6xf32, #tpu.memory_space<smem>>
    %57 = arith.negf %55 : vector<1x128xf32>
    %58 = math.exp %57 : vector<1x128xf32>
    %cst_19 = arith.constant 1.000000e+00 : f32
    %59 = vector.broadcast %cst_19 : f32 to vector<1x128xf32>
    %60 = arith.addf %59, %58 : vector<1x128xf32>
    %61 = arith.divf %59, %60 : vector<1x128xf32>
    %62 = vector.broadcast %56 : f32 to vector<1x128xf32>
    %63 = arith.mulf %62, %61 : vector<1x128xf32>
    %64 = arith.addf %33, %63 : vector<1x128xf32>
    %c2_20 = arith.constant 2 : index
    %65 = memref.load %arg3[%c2_20] : memref<6xf32, #tpu.memory_space<smem>>
    %66 = vector.broadcast %65 : f32 to vector<1x128xf32>
    %c0_21 = arith.constant 0 : index
    %c2_22 = arith.constant 2 : index
    %67 = memref.load %arg2[%c0_21, %c2_22] : memref<4x6xf32, #tpu.memory_space<smem>>
    %68 = vector.extract_strided_slice %0 {offsets = [0, 0], sizes = [1, 128], strides = [1, 1]} : vector<4x128xf32> to vector<1x128xf32>
    %69 = vector.broadcast %67 : f32 to vector<1x128xf32>
    %70 = arith.mulf %69, %68 : vector<1x128xf32>
    %71 = arith.addf %66, %70 : vector<1x128xf32>
    %c1_23 = arith.constant 1 : index
    %c2_24 = arith.constant 2 : index
    %72 = memref.load %arg2[%c1_23, %c2_24] : memref<4x6xf32, #tpu.memory_space<smem>>
    %73 = vector.extract_strided_slice %0 {offsets = [1, 0], sizes = [1, 128], strides = [1, 1]} : vector<4x128xf32> to vector<1x128xf32>
    %74 = vector.broadcast %72 : f32 to vector<1x128xf32>
    %75 = arith.mulf %74, %73 : vector<1x128xf32>
    %76 = arith.addf %71, %75 : vector<1x128xf32>
    %c2_25 = arith.constant 2 : index
    %c2_26 = arith.constant 2 : index
    %77 = memref.load %arg2[%c2_25, %c2_26] : memref<4x6xf32, #tpu.memory_space<smem>>
    %78 = vector.extract_strided_slice %0 {offsets = [2, 0], sizes = [1, 128], strides = [1, 1]} : vector<4x128xf32> to vector<1x128xf32>
    %79 = vector.broadcast %77 : f32 to vector<1x128xf32>
    %80 = arith.mulf %79, %78 : vector<1x128xf32>
    %81 = arith.addf %76, %80 : vector<1x128xf32>
    %c3_27 = arith.constant 3 : index
    %c2_28 = arith.constant 2 : index
    %82 = memref.load %arg2[%c3_27, %c2_28] : memref<4x6xf32, #tpu.memory_space<smem>>
    %83 = vector.extract_strided_slice %0 {offsets = [3, 0], sizes = [1, 128], strides = [1, 1]} : vector<4x128xf32> to vector<1x128xf32>
    %84 = vector.broadcast %82 : f32 to vector<1x128xf32>
    %85 = arith.mulf %84, %83 : vector<1x128xf32>
    %86 = arith.addf %81, %85 : vector<1x128xf32>
    %c2_29 = arith.constant 2 : index
    %87 = memref.load %arg4[%c2_29] : memref<6xf32, #tpu.memory_space<smem>>
    %88 = arith.negf %86 : vector<1x128xf32>
    %89 = math.exp %88 : vector<1x128xf32>
    %cst_30 = arith.constant 1.000000e+00 : f32
    %90 = vector.broadcast %cst_30 : f32 to vector<1x128xf32>
    %91 = arith.addf %90, %89 : vector<1x128xf32>
    %92 = arith.divf %90, %91 : vector<1x128xf32>
    %93 = vector.broadcast %87 : f32 to vector<1x128xf32>
    %94 = arith.mulf %93, %92 : vector<1x128xf32>
    %95 = arith.addf %64, %94 : vector<1x128xf32>
    %c3_31 = arith.constant 3 : index
    %96 = memref.load %arg3[%c3_31] : memref<6xf32, #tpu.memory_space<smem>>
    %97 = vector.broadcast %96 : f32 to vector<1x128xf32>
    %c0_32 = arith.constant 0 : index
    %c3_33 = arith.constant 3 : index
    %98 = memref.load %arg2[%c0_32, %c3_33] : memref<4x6xf32, #tpu.memory_space<smem>>
    %99 = vector.extract_strided_slice %0 {offsets = [0, 0], sizes = [1, 128], strides = [1, 1]} : vector<4x128xf32> to vector<1x128xf32>
    %100 = vector.broadcast %98 : f32 to vector<1x128xf32>
    %101 = arith.mulf %100, %99 : vector<1x128xf32>
    %102 = arith.addf %97, %101 : vector<1x128xf32>
    %c1_34 = arith.constant 1 : index
    %c3_35 = arith.constant 3 : index
    %103 = memref.load %arg2[%c1_34, %c3_35] : memref<4x6xf32, #tpu.memory_space<smem>>
    %104 = vector.extract_strided_slice %0 {offsets = [1, 0], sizes = [1, 128], strides = [1, 1]} : vector<4x128xf32> to vector<1x128xf32>
    %105 = vector.broadcast %103 : f32 to vector<1x128xf32>
    %106 = arith.mulf %105, %104 : vector<1x128xf32>
    %107 = arith.addf %102, %106 : vector<1x128xf32>
    %c2_36 = arith.constant 2 : index
    %c3_37 = arith.constant 3 : index
    %108 = memref.load %arg2[%c2_36, %c3_37] : memref<4x6xf32, #tpu.memory_space<smem>>
    %109 = vector.extract_strided_slice %0 {offsets = [2, 0], sizes = [1, 128], strides = [1, 1]} : vector<4x128xf32> to vector<1x128xf32>
    %110 = vector.broadcast %108 : f32 to vector<1x128xf32>
    %111 = arith.mulf %110, %109 : vector<1x128xf32>
    %112 = arith.addf %107, %111 : vector<1x128xf32>
    %c3_38 = arith.constant 3 : index
    %c3_39 = arith.constant 3 : index
    %113 = memref.load %arg2[%c3_38, %c3_39] : memref<4x6xf32, #tpu.memory_space<smem>>
    %114 = vector.extract_strided_slice %0 {offsets = [3, 0], sizes = [1, 128], strides = [1, 1]} : vector<4x128xf32> to vector<1x128xf32>
    %115 = vector.broadcast %113 : f32 to vector<1x128xf32>
    %116 = arith.mulf %115, %114 : vector<1x128xf32>
    %117 = arith.addf %112, %116 : vector<1x128xf32>
    %c3_40 = arith.constant 3 : index
    %118 = memref.load %arg4[%c3_40] : memref<6xf32, #tpu.memory_space<smem>>
    %119 = arith.negf %117 : vector<1x128xf32>
    %120 = math.exp %119 : vector<1x128xf32>
    %cst_41 = arith.constant 1.000000e+00 : f32
    %121 = vector.broadcast %cst_41 : f32 to vector<1x128xf32>
    %122 = arith.addf %121, %120 : vector<1x128xf32>
    %123 = arith.divf %121, %122 : vector<1x128xf32>
    %124 = vector.broadcast %118 : f32 to vector<1x128xf32>
    %125 = arith.mulf %124, %123 : vector<1x128xf32>
    %126 = arith.addf %95, %125 : vector<1x128xf32>
    %c4 = arith.constant 4 : index
    %127 = memref.load %arg3[%c4] : memref<6xf32, #tpu.memory_space<smem>>
    %128 = vector.broadcast %127 : f32 to vector<1x128xf32>
    %c0_42 = arith.constant 0 : index
    %c4_43 = arith.constant 4 : index
    %129 = memref.load %arg2[%c0_42, %c4_43] : memref<4x6xf32, #tpu.memory_space<smem>>
    %130 = vector.extract_strided_slice %0 {offsets = [0, 0], sizes = [1, 128], strides = [1, 1]} : vector<4x128xf32> to vector<1x128xf32>
    %131 = vector.broadcast %129 : f32 to vector<1x128xf32>
    %132 = arith.mulf %131, %130 : vector<1x128xf32>
    %133 = arith.addf %128, %132 : vector<1x128xf32>
    %c1_44 = arith.constant 1 : index
    %c4_45 = arith.constant 4 : index
    %134 = memref.load %arg2[%c1_44, %c4_45] : memref<4x6xf32, #tpu.memory_space<smem>>
    %135 = vector.extract_strided_slice %0 {offsets = [1, 0], sizes = [1, 128], strides = [1, 1]} : vector<4x128xf32> to vector<1x128xf32>
    %136 = vector.broadcast %134 : f32 to vector<1x128xf32>
    %137 = arith.mulf %136, %135 : vector<1x128xf32>
    %138 = arith.addf %133, %137 : vector<1x128xf32>
    %c2_46 = arith.constant 2 : index
    %c4_47 = arith.constant 4 : index
    %139 = memref.load %arg2[%c2_46, %c4_47] : memref<4x6xf32, #tpu.memory_space<smem>>
    %140 = vector.extract_strided_slice %0 {offsets = [2, 0], sizes = [1, 128], strides = [1, 1]} : vector<4x128xf32> to vector<1x128xf32>
    %141 = vector.broadcast %139 : f32 to vector<1x128xf32>
    %142 = arith.mulf %141, %140 : vector<1x128xf32>
    %143 = arith.addf %138, %142 : vector<1x128xf32>
    %c3_48 = arith.constant 3 : index
    %c4_49 = arith.constant 4 : index
    %144 = memref.load %arg2[%c3_48, %c4_49] : memref<4x6xf32, #tpu.memory_space<smem>>
    %145 = vector.extract_strided_slice %0 {offsets = [3, 0], sizes = [1, 128], strides = [1, 1]} : vector<4x128xf32> to vector<1x128xf32>
    %146 = vector.broadcast %144 : f32 to vector<1x128xf32>
    %147 = arith.mulf %146, %145 : vector<1x128xf32>
    %148 = arith.addf %143, %147 : vector<1x128xf32>
    %c4_50 = arith.constant 4 : index
    %149 = memref.load %arg4[%c4_50] : memref<6xf32, #tpu.memory_space<smem>>
    %150 = arith.negf %148 : vector<1x128xf32>
    %151 = math.exp %150 : vector<1x128xf32>
    %cst_51 = arith.constant 1.000000e+00 : f32
    %152 = vector.broadcast %cst_51 : f32 to vector<1x128xf32>
    %153 = arith.addf %152, %151 : vector<1x128xf32>
    %154 = arith.divf %152, %153 : vector<1x128xf32>
    %155 = vector.broadcast %149 : f32 to vector<1x128xf32>
    %156 = arith.mulf %155, %154 : vector<1x128xf32>
    %157 = arith.addf %126, %156 : vector<1x128xf32>
    %c5 = arith.constant 5 : index
    %158 = memref.load %arg3[%c5] : memref<6xf32, #tpu.memory_space<smem>>
    %159 = vector.broadcast %158 : f32 to vector<1x128xf32>
    %c0_52 = arith.constant 0 : index
    %c5_53 = arith.constant 5 : index
    %160 = memref.load %arg2[%c0_52, %c5_53] : memref<4x6xf32, #tpu.memory_space<smem>>
    %161 = vector.extract_strided_slice %0 {offsets = [0, 0], sizes = [1, 128], strides = [1, 1]} : vector<4x128xf32> to vector<1x128xf32>
    %162 = vector.broadcast %160 : f32 to vector<1x128xf32>
    %163 = arith.mulf %162, %161 : vector<1x128xf32>
    %164 = arith.addf %159, %163 : vector<1x128xf32>
    %c1_54 = arith.constant 1 : index
    %c5_55 = arith.constant 5 : index
    %165 = memref.load %arg2[%c1_54, %c5_55] : memref<4x6xf32, #tpu.memory_space<smem>>
    %166 = vector.extract_strided_slice %0 {offsets = [1, 0], sizes = [1, 128], strides = [1, 1]} : vector<4x128xf32> to vector<1x128xf32>
    %167 = vector.broadcast %165 : f32 to vector<1x128xf32>
    %168 = arith.mulf %167, %166 : vector<1x128xf32>
    %169 = arith.addf %164, %168 : vector<1x128xf32>
    %c2_56 = arith.constant 2 : index
    %c5_57 = arith.constant 5 : index
    %170 = memref.load %arg2[%c2_56, %c5_57] : memref<4x6xf32, #tpu.memory_space<smem>>
    %171 = vector.extract_strided_slice %0 {offsets = [2, 0], sizes = [1, 128], strides = [1, 1]} : vector<4x128xf32> to vector<1x128xf32>
    %172 = vector.broadcast %170 : f32 to vector<1x128xf32>
    %173 = arith.mulf %172, %171 : vector<1x128xf32>
    %174 = arith.addf %169, %173 : vector<1x128xf32>
    %c3_58 = arith.constant 3 : index
    %c5_59 = arith.constant 5 : index
    %175 = memref.load %arg2[%c3_58, %c5_59] : memref<4x6xf32, #tpu.memory_space<smem>>
    %176 = vector.extract_strided_slice %0 {offsets = [3, 0], sizes = [1, 128], strides = [1, 1]} : vector<4x128xf32> to vector<1x128xf32>
    %177 = vector.broadcast %175 : f32 to vector<1x128xf32>
    %178 = arith.mulf %177, %176 : vector<1x128xf32>
    %179 = arith.addf %174, %178 : vector<1x128xf32>
    %c5_60 = arith.constant 5 : index
    %180 = memref.load %arg4[%c5_60] : memref<6xf32, #tpu.memory_space<smem>>
    %181 = arith.negf %179 : vector<1x128xf32>
    %182 = math.exp %181 : vector<1x128xf32>
    %cst_61 = arith.constant 1.000000e+00 : f32
    %183 = vector.broadcast %cst_61 : f32 to vector<1x128xf32>
    %184 = arith.addf %183, %182 : vector<1x128xf32>
    %185 = arith.divf %183, %184 : vector<1x128xf32>
    %186 = vector.broadcast %180 : f32 to vector<1x128xf32>
    %187 = arith.mulf %186, %185 : vector<1x128xf32>
    %188 = arith.addf %157, %187 : vector<1x128xf32>
    %189 = arith.negf %188 : vector<1x128xf32>
    %190 = math.exp %189 : vector<1x128xf32>
    %cst_62 = arith.constant 1.000000e+00 : f32
    %191 = vector.broadcast %cst_62 : f32 to vector<1x128xf32>
    %192 = arith.addf %191, %190 : vector<1x128xf32>
    %193 = arith.divf %191, %192 : vector<1x128xf32>
    %c0_63 = arith.constant 0 : index
    %c0_64 = arith.constant 0 : index
    %194 = vector.load %arg6[%c0_63, %c0_64] : memref<1x128xf32, #tpu.memory_space<vmem>>, vector<1x128xf32>
    tpu.vector_store %arg6[%c0_63, %c0_64], %193 {strides = array<i32>} : memref<1x128xf32, #tpu.memory_space<vmem>>, vector<1x128xf32>,
    return
  }
  func.func @transform_0(%arg0: i32) -> (i32, i32) {
    %c0_i32 = arith.constant 0 : i32
    %c0_i32_0 = arith.constant 0 : i32
    return %c0_i32, %arg0 : i32, i32
  }
  func.func @transform_1(%arg0: i32) -> (i32, i32) {
    %c0_i32 = arith.constant 0 : i32
    %c0_i32_0 = arith.constant 0 : i32
    %c0_i32_1 = arith.constant 0 : i32
    return %c0_i32, %c0_i32_0 : i32, i32
  }
  func.func @transform_2(%arg0: i32) -> i32 {
    %c0_i32 = arith.constant 0 : i32
    %c0_i32_0 = arith.constant 0 : i32
    return %c0_i32 : i32
  }
  func.func @transform_3(%arg0: i32) -> i32 {
    %c0_i32 = arith.constant 0 : i32
    %c0_i32_0 = arith.constant 0 : i32
    return %c0_i32 : i32
  }
  func.func @transform_4(%arg0: i32) -> i32 {
    %c0_i32 = arith.constant 0 : i32
    %c0_i32_0 = arith.constant 0 : i32
    return %c0_i32 : i32
  }
  func.func @transform_5(%arg0: i32) -> (i32, i32) {
    %c0_i32 = arith.constant 0 : i32
    %c0_i32_0 = arith.constant 0 : i32
    return %c0_i32, %arg0 : i32, i32
  }
}

</mosaic_0001>

<llo_original>
// kernel: tpu_custom_call.1
$region0: #{tpu_custom_call.1}
  #allocation0 [shape = 'u32[]', space=smem, size = 0x4, offset = 0x4, fixed_abs, tag = 'smem constant byte address 0x4 - core index']
  #allocation1 [shape = 'u32[144,128]{1,0:T(1,128)}', space=vmem, size = 0x12000, scoped, tag = 'internal scratch']
  #allocation2 [shape = 'f32[1]{0:T(128)S(6)}', space=smem, size = 0x200, scoped, tag = 'scoped memory for tpu_custom_call.1']
  %s0 = inlined_call_operand.hbm [shape: f32[4,128], index: 0, kind: input, shape index: {}]
  %s1 = inlined_call_operand.vmem [shape: f32[4,6], index: 1, kind: input, shape index: {}]
  %s2 = inlined_call_operand.vmem [shape: f32[6], index: 2, kind: input, shape index: {}]
  %s3 = inlined_call_operand.vmem [shape: f32[6], index: 3, kind: input, shape index: {}]
  %s4 = inlined_call_operand.<no memory space> [shape: f32[1], index: 4, kind: input, shape index: {}]
  %s5 = inlined_call_operand.hbm [shape: f32[1,128], index: 5, kind: output, shape index: {}]
  %s6 = sld [smem:[#allocation0]]
  $region46: #{tpu_custom_call.1} parent=0
    _
  %s8 = ssub.s32 1, %s6
  %s9 = scalar_select 0, %s8, %s6
  %10 = sst [smem:[#allocation2]] %s4
  $region1: #{tpu_custom_call.1} parent=0
    #allocation3 [shape = 'u8[2048]{0}', space=vmem, size = 0x800, scoped, tag = 'input window, operand 0, single buffered']
    #allocation4 [shape = 's32[1]{0}', space=sflag, size = 0x4, scoped, tag = 'scoped memory for tpu_custom_call.1']
    #allocation5 [shape = 's32[1]{0}', space=sflag, size = 0x4, scoped, tag = 'scoped memory for tpu_custom_call.1']
    #allocation6 [shape = 's32[1]{0}', space=sflag, size = 0x4, scoped, tag = 'scoped memory for tpu_custom_call.1']
    #allocation7 [shape = 'u8[2048]{0}', space=smem, size = 0x800, scoped, tag = 'input window, operand 1, single buffered']
    #allocation8 [shape = 'u8[512]{0}', space=smem, size = 0x200, scoped, tag = 'input window, operand 2, single buffered']
    #allocation9 [shape = 's32[1]{0}', space=sflag, size = 0x4, scoped, tag = 'scoped memory for tpu_custom_call.1']
    #allocation10 [shape = 'u8[512]{0}', space=smem, size = 0x200, scoped, tag = 'input window, operand 3, single buffered']
    #allocation11 [shape = 'u8[512]{0}', space=vmem, size = 0x400, scoped, tag = 'output window, operand 0, single buffered']
    %11 = vsyncpa [#allocation4], 0
    %12 = vsyncpa [#allocation6], 0
    %13 = vsyncpa [#allocation9], 0
    %14 = vsyncpa [#allocation5], 0
    // Predicated region
    $region2: #{tpu_custom_call.1} parent=1 // pred_check
      _
    $region3: #{tpu_custom_call.1} parent=1 // pred_check_branch
      %16 = sbr.rel (0) target = $region5
    $region4: #{tpu_custom_call.1} parent=1 // pred_region
      %s18 = ssub.s32 64, 64
      %19 = vsyncadd [#allocation4], %s18
      %s21 = sshll.u32 [#allocation3], 4
      %s22 = int_to_ptr.vmem [resolvable:$true] %s21
      %24 = dma.hbm_to_vmem [thread:$0]  %s0, 64, %s22, [#allocation4]
    $region5: #{tpu_custom_call.1} parent=1 // pred_fallthru
      _
    // Predicated region
    $region6: #{tpu_custom_call.1} parent=1 // pred_check
      _
    $region7: #{tpu_custom_call.1} parent=1 // pred_check_branch
      %26 = sbr.rel (0) target = $region9
    $region8: #{tpu_custom_call.1} parent=1 // pred_region
      %s28 = ssub.s32 64, 64
      %29 = vsyncadd [#allocation6], %s28
      %s31 = sshll.u32 %s1, 4
      %s32 = int_to_ptr.vmem [resolvable:$true] %s31
      %34 = dma.vmem_to_smem %s32, 64, [#allocation7], [#allocation6]
    $region9: #{tpu_custom_call.1} parent=1 // pred_fallthru
      _
    // Predicated region
    $region10: #{tpu_custom_call.1} parent=1 // pred_check
      _
    $region11: #{tpu_custom_call.1} parent=1 // pred_check_branch
      %36 = sbr.rel (0) target = $region13
    $region12: #{tpu_custom_call.1} parent=1 // pred_region
      %s38 = ssub.s32 16, 16
      %39 = vsyncadd [#allocation9], %s38
      %s41 = sshll.u32 %s2, 4
      %s42 = int_to_ptr.vmem [resolvable:$true] %s41
      %44 = dma.vmem_to_smem %s42, 16, [#allocation8], [#allocation9]
    $region13: #{tpu_custom_call.1} parent=1 // pred_fallthru
      _
    // Predicated region
    $region14: #{tpu_custom_call.1} parent=1 // pred_check
      _
    $region15: #{tpu_custom_call.1} parent=1 // pred_check_branch
      %46 = sbr.rel (0) target = $region17
    $region16: #{tpu_custom_call.1} parent=1 // pred_region
      %s48 = ssub.s32 16, 16
      %49 = vsyncadd [#allocation9], %s48
      %s51 = sshll.u32 %s3, 4
      %s52 = int_to_ptr.vmem [resolvable:$true] %s51
      %54 = dma.vmem_to_smem %s52, 16, [#allocation10], [#allocation9]
    $region17: #{tpu_custom_call.1} parent=1 // pred_fallthru
      _
    // Predicated region
    $region18: #{tpu_custom_call.1} parent=1 // pred_check
      _
    $region19: #{tpu_custom_call.1} parent=1 // pred_check_branch
      %56 = sbr.rel (0) target = $region21
    $region20: #{tpu_custom_call.1} parent=1 // pred_region
      _
    $region21: #{tpu_custom_call.1} parent=1 // pred_fallthru
      _
    // Predicated region
    $region22: #{tpu_custom_call.1} parent=1 // pred_check
      _
    $region23: #{tpu_custom_call.1} parent=1 // pred_check_branch
      %58 = sbr.rel (0) target = $region25
    $region24: #{tpu_custom_call.1} parent=1 // pred_region
      %59 = dma.done [#allocation4], 64
    $region25: #{tpu_custom_call.1} parent=1 // pred_fallthru
      _
    // Predicated region
    $region26: #{tpu_custom_call.1} parent=1 // pred_check
      _
    $region27: #{tpu_custom_call.1} parent=1 // pred_check_branch
      %61 = sbr.rel (0) target = $region29
    $region28: #{tpu_custom_call.1} parent=1 // pred_region
      %62 = dma.done [#allocation6], 64
    $region29: #{tpu_custom_call.1} parent=1 // pred_fallthru
      _
    // Predicated region
    $region30: #{tpu_custom_call.1} parent=1 // pred_check
      _
    $region31: #{tpu_custom_call.1} parent=1 // pred_check_branch
      %64 = sbr.rel (0) target = $region33
    $region32: #{tpu_custom_call.1} parent=1 // pred_region
      %65 = dma.done [#allocation9], 16
    $region33: #{tpu_custom_call.1} parent=1 // pred_fallthru
      _
    // Predicated region
    $region34: #{tpu_custom_call.1} parent=1 // pred_check
      _
    $region35: #{tpu_custom_call.1} parent=1 // pred_check_branch
      %67 = sbr.rel (0) target = $region37
    $region36: #{tpu_custom_call.1} parent=1 // pred_region
      %68 = dma.done [#allocation9], 16
    $region37: #{tpu_custom_call.1} parent=1 // pred_fallthru
      _
    %69 = sfence
    %v70 = vld [vmem:[#allocation3] sm:$0xf]
    %s71 = sld [smem:[#allocation2]]
    %v72 = vstv %s71
    %s73 = sld [smem:[#allocation8]]
    %v74 = vstv %s73
    %s75 = sld [smem:[#allocation7]]
    %v76 = vstv %s75
    %v77 = vmul.f32 %v76, %v70
    %v78 = vadd.f32 %v74, %v77
    %s79 = sld [smem:[#allocation7 + $0x80]]
    %v80 = vstv %s79
    %v81 = vmul.f32 %v80, %v70
    %v83 = vrot.slane %v81, 1
    %v85 = vadd.f32 %v78, %v83
    %s86 = sld [smem:[#allocation7 + $0x100]]
    %v87 = vstv %s86
    %v88 = vmul.f32 %v87, %v70
    %v90 = vrot.slane %v88, 2
    %v92 = vadd.f32 %v85, %v90
    %s93 = sld [smem:[#allocation7 + $0x180]]
    %v94 = vstv %s93
    %v95 = vmul.f32 %v94, %v70
    %v97 = vrot.slane %v95, 3
    %v99 = vadd.f32 %v92, %v97
    %s100 = sld [smem:[#allocation10]]
    %v101 = vxor.u32 %v99, 2147483648
    %v102 = vmul.f32 %v101, 1.442695
    %v103 = vpow.pop %v102
    %v104 = vadd.f32 %v103, 1.0
    %v105 = vrcp.pop %v104
    %v106 = vmul.f32 1.0, %v105
    %v107 = vstv %s100
    %v108 = vmul.f32 %v107, %v106
    %v109 = vadd.f32 %v72, %v108
    %s110 = sld [smem:[#allocation8 + $0x1]]
    %v111 = vstv %s110
    %s112 = sld [smem:[#allocation7 + $0x1]]
    %v113 = vstv %s112
    %v114 = vmul.f32 %v113, %v70
    %v115 = vadd.f32 %v111, %v114
    %s116 = sld [smem:[#allocation7 + $0x81]]
    %v117 = vstv %s116
    %v118 = vmul.f32 %v117, %v70
    %v120 = vrot.slane %v118, 1
    %v122 = vadd.f32 %v115, %v120
    %s123 = sld [smem:[#allocation7 + $0x101]]
    %v124 = vstv %s123
    %v125 = vmul.f32 %v124, %v70
    %v127 = vrot.slane %v125, 2
    %v129 = vadd.f32 %v122, %v127
    %s130 = sld [smem:[#allocation7 + $0x181]]
    %v131 = vstv %s130
    %v132 = vmul.f32 %v131, %v70
    %v134 = vrot.slane %v132, 3
    %v136 = vadd.f32 %v129, %v134
    %s137 = sld [smem:[#allocation10 + $0x1]]
    %v138 = vxor.u32 %v136, 2147483648
    %v139 = vmul.f32 %v138, 1.442695
    %v140 = vpow.pop %v139
    %v141 = vadd.f32 %v140, 1.0
    %v142 = vrcp.pop %v141
    %v143 = vmul.f32 1.0, %v142
    %v144 = vstv %s137
    %v145 = vmul.f32 %v144, %v143
    %v146 = vadd.f32 %v109, %v145
    %s147 = sld [smem:[#allocation8 + $0x2]]
    %v148 = vstv %s147
    %s149 = sld [smem:[#allocation7 + $0x2]]
    %v150 = vstv %s149
    %v151 = vmul.f32 %v150, %v70
    %v152 = vadd.f32 %v148, %v151
    %s153 = sld [smem:[#allocation7 + $0x82]]
    %v154 = vstv %s153
    %v155 = vmul.f32 %v154, %v70
    %v157 = vrot.slane %v155, 1
    %v159 = vadd.f32 %v152, %v157
    %s160 = sld [smem:[#allocation7 + $0x102]]
    %v161 = vstv %s160
    %v162 = vmul.f32 %v161, %v70
    %v164 = vrot.slane %v162, 2
    %v166 = vadd.f32 %v159, %v164
    %s167 = sld [smem:[#allocation7 + $0x182]]
    %v168 = vstv %s167
    %v169 = vmul.f32 %v168, %v70
    %v171 = vrot.slane %v169, 3
    %v173 = vadd.f32 %v166, %v171
    %s174 = sld [smem:[#allocation10 + $0x2]]
    %v175 = vxor.u32 %v173, 2147483648
    %v176 = vmul.f32 %v175, 1.442695
    %v177 = vpow.pop %v176
    %v178 = vadd.f32 %v177, 1.0
    %v179 = vrcp.pop %v178
    %v180 = vmul.f32 1.0, %v179
    %v181 = vstv %s174
    %v182 = vmul.f32 %v181, %v180
    %v183 = vadd.f32 %v146, %v182
    %s184 = sld [smem:[#allocation8 + $0x3]]
    %v185 = vstv %s184
    %s186 = sld [smem:[#allocation7 + $0x3]]
    %v187 = vstv %s186
    %v188 = vmul.f32 %v187, %v70
    %v189 = vadd.f32 %v185, %v188
    %s190 = sld [smem:[#allocation7 + $0x83]]
    %v191 = vstv %s190
    %v192 = vmul.f32 %v191, %v70
    %v194 = vrot.slane %v192, 1
    %v196 = vadd.f32 %v189, %v194
    %s197 = sld [smem:[#allocation7 + $0x103]]
    %v198 = vstv %s197
    %v199 = vmul.f32 %v198, %v70
    %v201 = vrot.slane %v199, 2
    %v203 = vadd.f32 %v196, %v201
    %s204 = sld [smem:[#allocation7 + $0x183]]
    %v205 = vstv %s204
    %v206 = vmul.f32 %v205, %v70
    %v208 = vrot.slane %v206, 3
    %v210 = vadd.f32 %v203, %v208
    %s211 = sld [smem:[#allocation10 + $0x3]]
    %v212 = vxor.u32 %v210, 2147483648
    %v213 = vmul.f32 %v212, 1.442695
    %v214 = vpow.pop %v213
    %v215 = vadd.f32 %v214, 1.0
    %v216 = vrcp.pop %v215
    %v217 = vmul.f32 1.0, %v216
    %v218 = vstv %s211
    %v219 = vmul.f32 %v218, %v217
    %v220 = vadd.f32 %v183, %v219
    %s221 = sld [smem:[#allocation8 + $0x4]]
    %v222 = vstv %s221
    %s223 = sld [smem:[#allocation7 + $0x4]]
    %v224 = vstv %s223
    %v225 = vmul.f32 %v224, %v70
    %v226 = vadd.f32 %v222, %v225
    %s227 = sld [smem:[#allocation7 + $0x84]]
    %v228 = vstv %s227
    %v229 = vmul.f32 %v228, %v70
    %v231 = vrot.slane %v229, 1
    %v233 = vadd.f32 %v226, %v231
    %s234 = sld [smem:[#allocation7 + $0x104]]
    %v235 = vstv %s234
    %v236 = vmul.f32 %v235, %v70
    %v238 = vrot.slane %v236, 2
    %v240 = vadd.f32 %v233, %v238
    %s241 = sld [smem:[#allocation7 + $0x184]]
    %v242 = vstv %s241
    %v243 = vmul.f32 %v242, %v70
    %v245 = vrot.slane %v243, 3
    %v247 = vadd.f32 %v240, %v245
    %s248 = sld [smem:[#allocation10 + $0x4]]
    %v249 = vxor.u32 %v247, 2147483648
    %v250 = vmul.f32 %v249, 1.442695
    %v251 = vpow.pop %v250
    %v252 = vadd.f32 %v251, 1.0
    %v253 = vrcp.pop %v252
    %v254 = vmul.f32 1.0, %v253
    %v255 = vstv %s248
    %v256 = vmul.f32 %v255, %v254
    %v257 = vadd.f32 %v220, %v256
    %s258 = sld [smem:[#allocation8 + $0x5]]
    %v259 = vstv %s258
    %s260 = sld [smem:[#allocation7 + $0x5]]
    %v261 = vstv %s260
    %v262 = vmul.f32 %v261, %v70
    %v263 = vadd.f32 %v259, %v262
    %s264 = sld [smem:[#allocation7 + $0x85]]
    %v265 = vstv %s264
    %v266 = vmul.f32 %v265, %v70
    %v268 = vrot.slane %v266, 1
    %v270 = vadd.f32 %v263, %v268
    %s271 = sld [smem:[#allocation7 + $0x105]]
    %v272 = vstv %s271
    %v273 = vmul.f32 %v272, %v70
    %v275 = vrot.slane %v273, 2
    %v277 = vadd.f32 %v270, %v275
    %s278 = sld [smem:[#allocation7 + $0x185]]
    %v279 = vstv %s278
    %v280 = vmul.f32 %v279, %v70
    %v282 = vrot.slane %v280, 3
    %v284 = vadd.f32 %v277, %v282
    %s285 = sld [smem:[#allocation10 + $0x5]]
    %v286 = vxor.u32 %v284, 2147483648
    %v287 = vmul.f32 %v286, 1.442695
    %v288 = vpow.pop %v287
    %v289 = vadd.f32 %v288, 1.0
    %v290 = vrcp.pop %v289
    %v291 = vmul.f32 1.0, %v290
    %v292 = vstv %s285
    %v293 = vmul.f32 %v292, %v291
    %v294 = vadd.f32 %v257, %v293
    %v295 = vxor.u32 %v294, 2147483648
    %v296 = vmul.f32 %v295, 1.442695
    %v297 = vpow.pop %v296
    %v298 = vadd.f32 %v297, 1.0
    %v299 = vrcp.pop %v298
    %v300 = vmul.f32 1.0, %v299
    %301 = vst [vmem:[#allocation11] sm:$0x1] %v300
    // Predicated region
    $region38: #{tpu_custom_call.1} parent=1 // pred_check
      _
    $region39: #{tpu_custom_call.1} parent=1 // pred_check_branch
      %303 = sbr.rel (0) target = $region41
    $region40: #{tpu_custom_call.1} parent=1 // pred_region
      %s305 = ssub.s32 16, 16
      %306 = vsyncadd [#allocation5], %s305
      %s308 = sshll.u32 [#allocation11], 4
      %s309 = int_to_ptr.vmem [resolvable:$true] %s308
      %311 = dma.vmem_to_hbm [thread:$0]  %s309, 16, %s5, [#allocation5]
    $region41: #{tpu_custom_call.1} parent=1 // pred_fallthru
      _
    // Predicated region
    $region42: #{tpu_custom_call.1} parent=1 // pred_check
      _
    $region43: #{tpu_custom_call.1} parent=1 // pred_check_branch
      %313 = sbr.rel (0) target = $region45
    $region44: #{tpu_custom_call.1} parent=1 // pred_region
      %314 = dma.done [#allocation5], 16
    $region45: #{tpu_custom_call.1} parent=1 // pred_fallthru
      _
    %315 = vsyncpa [#allocation4], 1
    %316 = vsyncpa [#allocation5], 1
    %317 = vsyncpa [#allocation6], 1
    %318 = vsyncpa [#allocation9], 1

</llo_original>
